<compile_context>
chip_gen: v7x
topology: tpu7x:2x2x1
jax: 0.10.0
libtpu: 0.0.40
codegen_flags: <defaults>
</compile_context>

<pallas_src>
import numpy as np
import jax
import jax.numpy as jnp
from jax.experimental import pallas as pl
from jax.experimental.pallas import tpu as pltpu

HIDDEN = 64  # fixed by the module architecture


# ----------------------------------------------------------------------------
# Pallas kernel: 3-layer MLP critic, feature-major (batch on the lane axis).
#   x_ref  : (in, TM)            tile of x.T
#   w1_ref : (64, in)            torch layout (out, in)
#   b1_ref : (64, 1)
#   w2_ref : (64, 64)
#   b2_ref : (64, 1)
#   w3_ref : (outs, 64)
#   b3_ref : (outs, 1)
#   out_ref: (outs, TM)          lane-dense output tile
# ----------------------------------------------------------------------------
def critic_kernel(x_ref, w1_ref, b1_ref, w2_ref, b2_ref, w3_ref, b3_ref, out_ref):
    x = x_ref[...]  # (in, TM) in the compute dtype (f32 or bf16)

    # Layer 1: Linear + Tanh (f32 accumulation, bias+tanh in f32)
    h1 = jnp.dot(w1_ref[...], x, preferred_element_type=jnp.float32) + b1_ref[...]
    h1 = jnp.tanh(h1)

    # Layer 2: Linear + Tanh
    h2 = jnp.dot(w2_ref[...], h1.astype(w2_ref.dtype),
                 preferred_element_type=jnp.float32) + b2_ref[...]
    h2 = jnp.tanh(h2)

    # Critic head
    out = jnp.dot(w3_ref[...], h2.astype(w3_ref.dtype),
                  preferred_element_type=jnp.float32) + b3_ref[...]
    out_ref[...] = out.astype(out_ref.dtype)


def _round_up(x, m):
    return ((x + m - 1) // m) * m


def _pick_tm(batch, in_size, vmem_budget_bytes=16 * 1024 * 1024):
    """Largest lane-tile (multiple of 128) whose double-buffered x tile + activations
    fit well inside the smallest scoped-VMEM default (v5e: 16 MiB, v7x: 32 MiB)."""
    def vmem_bytes(t):
        x_bufs = 2 * in_size * t * 4      # double-buffered input tile
        out_bufs = 2 * t * 4              # double-buffered output tile (outs small)
        acts = 3 * HIDDEN * t * 4         # h1/h2/intermediates in f32
        return x_bufs + out_bufs + acts

    tm = 4096
    while tm > 128 and vmem_bytes(tm) > vmem_budget_bytes:
        tm //= 2
    return min(tm, _round_up(batch, 128))


def mappo_central_critic_forward(x, params, *, use_bf16=False):
    """Centralized critic forward pass via a batch-tiled Pallas TPU kernel.

    x      : (batch, cent_in_size) float array
    params : dict with torch-layout weights w1 (64,in), w2 (64,64), w3 (outs,64)
             and biases b1 (64,), b2 (64,), b3 (outs,)
    returns: (batch, critic_outs) float32
    """
    w1, b1 = params["w1"], params["b1"]
    w2, b2 = params["w2"], params["b2"]
    w3, b3 = params["w3"], params["b3"]

    batch, in_size = x.shape
    critic_outs = w3.shape[0]

    compute_dtype = jnp.bfloat16 if use_bf16 else jnp.float32
    xt = jnp.asarray(x, compute_dtype).T                    # (in, batch): batch on lanes
    w1c = jnp.asarray(w1, compute_dtype)
    w2c = jnp.asarray(w2, compute_dtype)
    w3c = jnp.asarray(w3, compute_dtype)
    b1c = jnp.asarray(b1, jnp.float32).reshape(HIDDEN, 1)   # biases stay f32
    b2c = jnp.asarray(b2, jnp.float32).reshape(HIDDEN, 1)
    b3c = jnp.asarray(b3, jnp.float32).reshape(critic_outs, 1)

    tm = _pick_tm(batch, in_size)
    padded = _round_up(batch, tm)
    if padded != batch:
        xt = jnp.pad(xt, ((0, 0), (0, padded - batch)))     # zero-pad lanes; sliced off
    grid = (padded // tm,)

    resident = lambda i: (0, 0)  # weights/biases: constant block -> DMA'd once

    out_t = pl.pallas_call(
        critic_kernel,
        out_shape=jax.ShapeDtypeStruct((critic_outs, padded), jnp.float32),
        grid_spec=pltpu.PrefetchScalarGridSpec(
            num_scalar_prefetch=0,
            grid=grid,
            in_specs=[
                pl.BlockSpec((in_size, tm), lambda i: (0, i)),      # x.T tile
                pl.BlockSpec((HIDDEN, in_size), resident),          # W1
                pl.BlockSpec((HIDDEN, 1), resident),                # b1
                pl.BlockSpec((HIDDEN, HIDDEN), resident),           # W2
                pl.BlockSpec((HIDDEN, 1), resident),                # b2
                pl.BlockSpec((critic_outs, HIDDEN), resident),      # W3
                pl.BlockSpec((critic_outs, 1), resident),           # b3
            ],
            out_specs=pl.BlockSpec((critic_outs, tm), lambda i: (0, i)),
        ),
        compiler_params=pltpu.CompilerParams(
            dimension_semantics=("parallel",),
        ),
    )(xt, w1c, b1c, w2c, b2c, w3c, b3c)

    # (critic_outs, padded) -> (batch, critic_outs)
    return out_t[:, :batch].T


# ----------------------------------------------------------------------------
# Deterministic parameter init mirroring torch.nn.init.orthogonal_(std=sqrt(2)),
# bias_const=0.0. Weights kept in torch layout (out_features, in_features).
# ----------------------------------------------------------------------------
def orthogonal_init(key, out_features, in_features, gain):
    rows, cols = out_features, in_features
    big, small = max(rows, cols), min(rows, cols)
    a = jax.random.normal(key, (big, small), dtype=jnp.float32)
    q, r = jnp.linalg.qr(a)
    q = q * jnp.sign(jnp.diagonal(r))  # sign fix -> deterministic decomposition
    if rows < cols:
        q = q.T
    return gain * q[:rows, :cols]


def make_critic_params(key, cent_in_size, critic_outs=1):
    gain = float(np.sqrt(2.0))
    k1, k2, k3 = jax.random.split(key, 3)
    return {
        "w1": orthogonal_init(k1, HIDDEN, cent_in_size, gain),   # (64, in)
        "b1": jnp.zeros((HIDDEN,), jnp.float32),
        "w2": orthogonal_init(k2, HIDDEN, HIDDEN, gain),         # (64, 64)
        "b2": jnp.zeros((HIDDEN,), jnp.float32),
        "w3": orthogonal_init(k3, critic_outs, HIDDEN, gain),    # (outs, 64)
        "b3": jnp.zeros((critic_outs,), jnp.float32),
    }


def reference_forward(x, params):
    """Pure-JAX reference of the same MLP (torch-layout weights)."""
    h1 = jnp.tanh(x @ params["w1"].T + params["b1"])
    h2 = jnp.tanh(h1 @ params["w2"].T + params["b2"])
    return h2 @ params["w3"].T + params["b3"]


if __name__ == "__main__":
    key = jax.random.PRNGKey(0)
    k_params, k_x = jax.random.split(key)

    batch = 8
    cent_in_size = 32     # flattened centralized Box observation, e.g. Box(shape=(32,))
    critic_outs = 1

    params = make_critic_params(k_params, cent_in_size, critic_outs)
    x = jax.random.normal(k_x, (batch, cent_in_size), dtype=jnp.float32)

    # f32 path — tight correctness check against the pure-JAX reference.
    values = jax.block_until_ready(mappo_central_critic_forward(x, params))
    ref = reference_forward(x, params)
    assert values.shape == (batch, critic_outs)
    assert jnp.allclose(values, ref, atol=1e-4, rtol=1e-4)

    # bf16-operand path (bf16-native MXU + halved HBM bytes on x) — loose check.
    values_bf16 = jax.block_until_ready(
        mappo_central_critic_forward(x, params, use_bf16=True))
    assert values_bf16.shape == (batch, critic_outs)
    assert jnp.allclose(values_bf16, ref, atol=1e-1, rtol=1e-1)

    print("KERNEL_OK")
</pallas_src>

<mosaic_0001>
module attributes {stable_mosaic.version = 11 : i64} {
  func.func @critic_kernel(%arg0: i32, %arg1: memref<32x128xf32, #tpu.memory_space<vmem>>, %arg2: memref<64x32xf32, #tpu.memory_space<vmem>>, %arg3: memref<64x1xf32, #tpu.memory_space<vmem>>, %arg4: memref<64x64xf32, #tpu.memory_space<vmem>>, %arg5: memref<64x1xf32, #tpu.memory_space<vmem>>, %arg6: memref<1x64xf32, #tpu.memory_space<vmem>>, %arg7: memref<1x1xf32, #tpu.memory_space<vmem>>, %arg8: memref<1x128xf32, #tpu.memory_space<vmem>>) attributes {dimension_semantics = [#tpu.dimension_semantics<parallel>], iteration_bounds = array<i64: 1>, scalar_prefetch = 0 : i64, scratch_operands = 0 : i64, tpu.core_type = #tpu.core_type<tc>, window_params = [{transform_indices = @transform_0, window_bounds = array<i64: 32, 128>}, {pipeline_mode = #tpu.pipeline_mode<synchronous>, transform_indices = @transform_1, window_bounds = array<i64: 64, 32>}, {pipeline_mode = #tpu.pipeline_mode<synchronous>, transform_indices = @transform_2, window_bounds = array<i64: 64, 1>}, {pipeline_mode = #tpu.pipeline_mode<synchronous>, transform_indices = @transform_3, window_bounds = array<i64: 64, 64>}, {pipeline_mode = #tpu.pipeline_mode<synchronous>, transform_indices = @transform_4, window_bounds = array<i64: 64, 1>}, {pipeline_mode = #tpu.pipeline_mode<synchronous>, transform_indices = @transform_5, window_bounds = array<i64: 1, 64>}, {pipeline_mode = #tpu.pipeline_mode<synchronous>, transform_indices = @transform_6, window_bounds = array<i64: 1, 1>}, {transform_indices = @transform_7, window_bounds = array<i64: 1, 128>}]} {
    %c0 = arith.constant 0 : index
    %c0_0 = arith.constant 0 : index
    %0 = vector.load %arg1[%c0, %c0_0] : memref<32x128xf32, #tpu.memory_space<vmem>>, vector<32x128xf32>
    %c0_1 = arith.constant 0 : index
    %c0_2 = arith.constant 0 : index
    %1 = vector.load %arg2[%c0_1, %c0_2] : memref<64x32xf32, #tpu.memory_space<vmem>>, vector<64x32xf32>
    %cst = arith.constant dense<0.000000e+00> : vector<64x128xf32>
    %2 = tpu.matmul %1, %0, %cst {dimension_numbers = #tpu.dot_dimension_numbers<[1], [0], [0], [1], [0, 0, 1, 1], [], []>} : vector<64x32xf32>, vector<32x128xf32>, vector<64x128xf32> -> vector<64x128xf32>
    %c0_3 = arith.constant 0 : index
    %c0_4 = arith.constant 0 : index
    %3 = vector.load %arg3[%c0_3, %c0_4] : memref<64x1xf32, #tpu.memory_space<vmem>>, vector<64x1xf32>
    %4 = vector.broadcast %3 : vector<64x1xf32> to vector<64x128xf32>
    %5 = arith.addf %2, %4 : vector<64x128xf32>
    %6 = math.tanh %5 : vector<64x128xf32>
    %c0_5 = arith.constant 0 : index
    %c0_6 = arith.constant 0 : index
    %7 = vector.load %arg4[%c0_5, %c0_6] : memref<64x64xf32, #tpu.memory_space<vmem>>, vector<64x64xf32>
    %cst_7 = arith.constant dense<0.000000e+00> : vector<64x128xf32>
    %8 = tpu.matmul %7, %6, %cst_7 {dimension_numbers = #tpu.dot_dimension_numbers<[1], [0], [0], [1], [0, 0, 1, 1], [], []>} : vector<64x64xf32>, vector<64x128xf32>, vector<64x128xf32> -> vector<64x128xf32>
    %c0_8 = arith.constant 0 : index
    %c0_9 = arith.constant 0 : index
    %9 = vector.load %arg5[%c0_8, %c0_9] : memref<64x1xf32, #tpu.memory_space<vmem>>, vector<64x1xf32>
    %10 = vector.broadcast %9 : vector<64x1xf32> to vector<64x128xf32>
    %11 = arith.addf %8, %10 : vector<64x128xf32>
    %12 = math.tanh %11 : vector<64x128xf32>
    %c0_10 = arith.constant 0 : index
    %c0_11 = arith.constant 0 : index
    %13 = vector.load %arg6[%c0_10, %c0_11] : memref<1x64xf32, #tpu.memory_space<vmem>>, vector<1x64xf32>
    %cst_12 = arith.constant dense<0.000000e+00> : vector<1x128xf32>
    %14 = tpu.matmul %13, %12, %cst_12 {dimension_numbers = #tpu.dot_dimension_numbers<[1], [0], [0], [1], [0, 0, 1, 1], [], []>} : vector<1x64xf32>, vector<64x128xf32>, vector<1x128xf32> -> vector<1x128xf32>
    %c0_13 = arith.constant 0 : index
    %c0_14 = arith.constant 0 : index
    %15 = vector.load %arg7[%c0_13, %c0_14] : memref<1x1xf32, #tpu.memory_space<vmem>>, vector<1x1xf32>
    %16 = vector.broadcast %15 : vector<1x1xf32> to vector<1x128xf32>
    %17 = arith.addf %14, %16 : vector<1x128xf32>
    %c0_15 = arith.constant 0 : index
    %c0_16 = arith.constant 0 : index
    %18 = vector.load %arg8[%c0_15, %c0_16] : memref<1x128xf32, #tpu.memory_space<vmem>>, vector<1x128xf32>
    tpu.vector_store %arg8[%c0_15, %c0_16], %17 {strides = array<i32>} : memref<1x128xf32, #tpu.memory_space<vmem>>, vector<1x128xf32>,
    return
  }
  func.func @transform_0(%arg0: i32) -> (i32, i32) {
    %c0_i32 = arith.constant 0 : i32
    %c0_i32_0 = arith.constant 0 : i32
    return %c0_i32, %arg0 : i32, i32
  }
  func.func @transform_1(%arg0: i32) -> (i32, i32) {
    %c0_i32 = arith.constant 0 : i32
    %c0_i32_0 = arith.constant 0 : i32
    %c0_i32_1 = arith.constant 0 : i32
    return %c0_i32, %c0_i32_0 : i32, i32
  }
  func.func @transform_2(%arg0: i32) -> (i32, i32) {
    %c0_i32 = arith.constant 0 : i32
    %c0_i32_0 = arith.constant 0 : i32
    %c0_i32_1 = arith.constant 0 : i32
    return %c0_i32, %c0_i32_0 : i32, i32
  }
  func.func @transform_3(%arg0: i32) -> (i32, i32) {
    %c0_i32 = arith.constant 0 : i32
    %c0_i32_0 = arith.constant 0 : i32
    %c0_i32_1 = arith.constant 0 : i32
    return %c0_i32, %c0_i32_0 : i32, i32
  }
  func.func @transform_4(%arg0: i32) -> (i32, i32) {
    %c0_i32 = arith.constant 0 : i32
    %c0_i32_0 = arith.constant 0 : i32
    %c0_i32_1 = arith.constant 0 : i32
    return %c0_i32, %c0_i32_0 : i32, i32
  }
  func.func @transform_5(%arg0: i32) -> (i32, i32) {
    %c0_i32 = arith.constant 0 : i32
    %c0_i32_0 = arith.constant 0 : i32
    %c0_i32_1 = arith.constant 0 : i32
    return %c0_i32, %c0_i32_0 : i32, i32
  }
  func.func @transform_6(%arg0: i32) -> (i32, i32) {
    %c0_i32 = arith.constant 0 : i32
    %c0_i32_0 = arith.constant 0 : i32
    %c0_i32_1 = arith.constant 0 : i32
    return %c0_i32, %c0_i32_0 : i32, i32
  }
  func.func @transform_7(%arg0: i32) -> (i32, i32) {
    %c0_i32 = arith.constant 0 : i32
    %c0_i32_0 = arith.constant 0 : i32
    return %c0_i32, %arg0 : i32, i32
  }
}

</mosaic_0001>

<llo_original>
// kernel: tpu_custom_call.1
$region0: #{tpu_custom_call.1}
  #allocation0 [shape = 'u32[]', space=smem, size = 0x4, offset = 0x4, fixed_abs, tag = 'smem constant byte address 0x4 - core index']
  #allocation1 [shape = 'u32[144,128]{1,0:T(1,128)}', space=vmem, size = 0x12000, scoped, tag = 'internal scratch']
  #allocation2 [shape = 'f32[1,1]{1,0:T(1,128)S(1)}', space=vmem, size = 0x200, scoped, tag = 'scoped memory for tpu_custom_call.1']
  %s0 = inlined_call_operand.vmem [shape: f32[32,128], index: 0, kind: input, shape index: {}]
  %s1 = inlined_call_operand.vmem [shape: f32[64,32], index: 1, kind: input, shape index: {}]
  %s2 = inlined_call_operand.vmem [shape: f32[64,1], index: 2, kind: input, shape index: {}]
  %s3 = inlined_call_operand.vmem [shape: f32[64,64], index: 3, kind: input, shape index: {}]
  %s4 = inlined_call_operand.vmem [shape: f32[64,1], index: 4, kind: input, shape index: {}]
  %s5 = inlined_call_operand.vmem [shape: f32[1,64], index: 5, kind: input, shape index: {}]
  %s6 = inlined_call_operand.<no memory space> [shape: f32[1,1], index: 6, kind: input, shape index: {}]
  %s7 = inlined_call_operand.hbm [shape: f32[1,128], index: 7, kind: output, shape index: {}]
  %s8 = sld [smem:[#allocation0]]
  $region38: #{tpu_custom_call.1} parent=0
    _
  %s10 = ssub.s32 1, %s8
  %s11 = scalar_select 0, %s10, %s8
  %v12 = vstv %s6
  %13 = vst [vmem:[#allocation2] sm:$0x1] %v12
  $region1: #{tpu_custom_call.1} parent=0
    #allocation3 [shape = 'u8[512]{0}', space=vmem, size = 0x400, scoped, tag = 'output window, operand 0, single buffered']
    #allocation4 [shape = 's32[1]{0}', space=sflag, size = 0x4, scoped, tag = 'scoped memory for tpu_custom_call.1']
    %14 = vsyncpa [#allocation4], 0
    // Predicated region
    $region2: #{tpu_custom_call.1} parent=1 // pred_check
      _
    $region3: #{tpu_custom_call.1} parent=1 // pred_check_branch
      %16 = sbr.rel (0) target = $region5
    $region4: #{tpu_custom_call.1} parent=1 // pred_region
      _
    $region5: #{tpu_custom_call.1} parent=1 // pred_fallthru
      _
    // Predicated region
    $region6: #{tpu_custom_call.1} parent=1 // pred_check
      _
    $region7: #{tpu_custom_call.1} parent=1 // pred_check_branch
      %18 = sbr.rel (0) target = $region9
    $region8: #{tpu_custom_call.1} parent=1 // pred_region
      _
    $region9: #{tpu_custom_call.1} parent=1 // pred_fallthru
      _
    // Predicated region
    $region10: #{tpu_custom_call.1} parent=1 // pred_check
      _
    $region11: #{tpu_custom_call.1} parent=1 // pred_check_branch
      %20 = sbr.rel (0) target = $region13
    $region12: #{tpu_custom_call.1} parent=1 // pred_region
      _
    $region13: #{tpu_custom_call.1} parent=1 // pred_fallthru
      _
    // Predicated region
    $region14: #{tpu_custom_call.1} parent=1 // pred_check
      _
    $region15: #{tpu_custom_call.1} parent=1 // pred_check_branch
      %22 = sbr.rel (0) target = $region17
    $region16: #{tpu_custom_call.1} parent=1 // pred_region
      _
    $region17: #{tpu_custom_call.1} parent=1 // pred_fallthru
      _
    // Predicated region
    $region18: #{tpu_custom_call.1} parent=1 // pred_check
      _
    $region19: #{tpu_custom_call.1} parent=1 // pred_check_branch
      %24 = sbr.rel (0) target = $region21
    $region20: #{tpu_custom_call.1} parent=1 // pred_region
      _
    $region21: #{tpu_custom_call.1} parent=1 // pred_fallthru
      _
    // Predicated region
    $region22: #{tpu_custom_call.1} parent=1 // pred_check
      _
    $region23: #{tpu_custom_call.1} parent=1 // pred_check_branch
      %26 = sbr.rel (0) target = $region25
    $region24: #{tpu_custom_call.1} parent=1 // pred_region
      _
    $region25: #{tpu_custom_call.1} parent=1 // pred_fallthru
      _
    // Predicated region
    $region26: #{tpu_custom_call.1} parent=1 // pred_check
      _
    $region27: #{tpu_custom_call.1} parent=1 // pred_check_branch
      %28 = sbr.rel (0) target = $region29
    $region28: #{tpu_custom_call.1} parent=1 // pred_region
      _
    $region29: #{tpu_custom_call.1} parent=1 // pred_fallthru
      _
    %v29 = vld [vmem:[%s0] sm:$0xff]
    %v30 = vld [vmem:[%s0 + $0x8] sm:$0xff]
    %v31 = vld [vmem:[%s0 + $0x10] sm:$0xff]
    %v32 = vld [vmem:[%s0 + $0x18] sm:$0xff]
    %v33 = vld [vmem:[%s1] sm:$0xff]
    %v34 = vld [vmem:[%s1 + $0x8] sm:$0xff]
    %v35 = vld [vmem:[%s1 + $0x10] sm:$0xff]
    %v36 = vld [vmem:[%s1 + $0x18] sm:$0xff]
    %v37 = vld [vmem:[%s1 + $0x20] sm:$0xff]
    %v38 = vld [vmem:[%s1 + $0x28] sm:$0xff]
    %v39 = vld [vmem:[%s1 + $0x30] sm:$0xff]
    %v40 = vld [vmem:[%s1 + $0x38] sm:$0xff]
    %v41 = vld [vmem:[%s2] sm:$0xff]
    %v42 = vld [vmem:[%s2 + $0x8] sm:$0xff]
    %v43 = vld [vmem:[%s2 + $0x10] sm:$0xff]
    %v44 = vld [vmem:[%s2 + $0x18] sm:$0xff]
    %v45 = vld [vmem:[%s2 + $0x20] sm:$0xff]
    %v46 = vld [vmem:[%s2 + $0x28] sm:$0xff]
    %v47 = vld [vmem:[%s2 + $0x30] sm:$0xff]
    %v48 = vld [vmem:[%s2 + $0x38] sm:$0xff]
    %50 = vset.pattern.permute.xlu0 0
    %51 = vperm.xlu0 %50, %v41
    %v52 = vpop.permute.xlu0 %51
    %55 = vset.pattern.permute.xlu0 0
    %56 = vperm.xlu0 %55, %v42
    %v57 = vpop.permute.xlu0 %56
    %60 = vset.pattern.permute.xlu0 0
    %61 = vperm.xlu0 %60, %v43
    %v62 = vpop.permute.xlu0 %61
    %65 = vset.pattern.permute.xlu0 0
    %66 = vperm.xlu0 %65, %v44
    %v67 = vpop.permute.xlu0 %66
    %70 = vset.pattern.permute.xlu0 0
    %71 = vperm.xlu0 %70, %v45
    %v72 = vpop.permute.xlu0 %71
    %75 = vset.pattern.permute.xlu0 0
    %76 = vperm.xlu0 %75, %v46
    %v77 = vpop.permute.xlu0 %76
    %80 = vset.pattern.permute.xlu0 0
    %81 = vperm.xlu0 %80, %v47
    %v82 = vpop.permute.xlu0 %81
    %85 = vset.pattern.permute.xlu0 0
    %86 = vperm.xlu0 %85, %v48
    %v87 = vpop.permute.xlu0 %86
    %vm89 = vcmask 261120
    %v91 = vsel %vm89, %v33, 0
    %v94 = vsel %vm89, %v34, 0
    %v97 = vsel %vm89, %v35, 0
    %v100 = vsel %vm89, %v36, 0
    %v103 = vsel %vm89, %v37, 0
    %v106 = vsel %vm89, %v38, 0
    %v109 = vsel %vm89, %v39, 0
    %v112 = vsel %vm89, %v40, 0
    %114 = vmatprep.subr.mxu0 0.0
    %115 = vmatpush1.msra.mxu0 %v29
    %116 = vmatprep.subr.mxu0 0.0
    %117 = vmatpush1.msra.mxu0 %v30
    %118 = vmatprep.subr.mxu0 0.0
    %119 = vmatpush1.msra.mxu0 %v31
    %120 = vmatprep.subr.mxu0 0.0
    %121 = vmatpush1.msra.mxu0 %v32
    %122 = vmatprep.subr.mxu0 0.0
    %123 = vmatpush1.msra.mxu0 0.0
    %124 = vmatprep.subr.mxu0 0.0
    %125 = vmatpush1.msra.mxu0 0.0
    %126 = vmatprep.subr.mxu0 0.0
    %127 = vmatpush1.msra.mxu0 0.0
    %128 = vmatprep.subr.mxu0 0.0
    %129 = vmatpush1.msra.mxu0 0.0
    %130 = vmatprep.subr.mxu0 0.0
    %131 = vmatpush1.msra.mxu0 0.0
    %132 = vmatprep.subr.mxu0 0.0
    %133 = vmatpush1.msra.mxu0 0.0
    %134 = vmatprep.subr.mxu0 0.0
    %135 = vmatpush1.msra.mxu0 0.0
    %136 = vmatprep.subr.mxu0 0.0
    %137 = vmatpush1.msra.mxu0 0.0
    %138 = vmatprep.subr.mxu0 0.0
    %139 = vmatpush1.msra.mxu0 0.0
    %140 = vmatprep.subr.mxu0 0.0
    %141 = vmatpush1.msra.mxu0 0.0
    %142 = vmatprep.subr.mxu0 0.0
    %143 = vmatpush1.msra.mxu0 0.0
    %144 = vmatprep.subr.mxu0 0.0
    %145 = vmatpush1.msra.mxu0 0.0
    %146 = vmatprep.subr.mxu0 0.0
    %147 = vmatpush1.msra.mxu0 0.0
    %148 = vmatprep.subr.mxu0 0.0
    %149 = vmatpush1.msra.mxu0 0.0
    %150 = vmatprep.subr.mxu0 0.0
    %151 = vmatpush1.msra.mxu0 0.0
    %152 = vmatprep.subr.mxu0 0.0
    %153 = vmatpush1.msra.mxu0 0.0
    %154 = vmatprep.subr.mxu0 0.0
    %155 = vmatpush1.msra.mxu0 0.0
    %156 = vmatprep.subr.mxu0 0.0
    %157 = vmatpush1.msra.mxu0 0.0
    %158 = vmatprep.subr.mxu0 0.0
    %159 = vmatpush1.msra.mxu0 0.0
    %160 = vmatprep.subr.mxu0 0.0
    %161 = vmatpush1.msra.mxu0 0.0
    %162 = vmatprep.subr.mxu0 0.0
    %163 = vmatpush1.msra.mxu0 0.0
    %164 = vmatprep.subr.mxu0 0.0
    %165 = vmatpush1.msra.mxu0 0.0
    %166 = vmatprep.subr.mxu0 0.0
    %167 = vmatpush1.msra.mxu0 0.0
    %168 = vmatprep.subr.mxu0 0.0
    %169 = vmatpush1.msra.mxu0 0.0
    %170 = vmatprep.subr.mxu0 0.0
    %171 = vmatpush1.msra.mxu0 0.0
    %172 = vmatprep.subr.mxu0 0.0
    %173 = vmatpush1.msra.mxu0 0.0
    %174 = vmatprep.subr.mxu0 0.0
    %175 = vmatpush1.msra.mxu0 0.0
    %176 = vmatprep.subr.mxu0 0.0
    %177 = vmatpush1.msra.mxu0 0.0
    %178 = vmatprep.mubr.f32.mxu0 0.0
    %179 = vmatmul.mubr.f32.gmra.mrb[0].mxu0 %v91
    %v180 = vpop.f32.mrb[0].mxu0
    %v181 = vadd.f32 %v52, %v180
    %v182 = vpop.f32.mrb[0].mxu0
    %183 = vmatprep.mubr.f32.mxu0 0.0
    %184 = vmatmul.mubr.f32.gmra.mrb[0].mxu0 %v94
    %v185 = vpop.f32.mrb[0].mxu0
    %v186 = vadd.f32 %v57, %v185
    %v187 = vpop.f32.mrb[0].mxu0
    %188 = vmatprep.mubr.f32.mxu0 0.0
    %189 = vmatmul.mubr.f32.gmra.mrb[0].mxu0 %v97
    %v190 = vpop.f32.mrb[0].mxu0
    %v191 = vadd.f32 %v62, %v190
    %v192 = vpop.f32.mrb[0].mxu0
    %193 = vmatprep.mubr.f32.mxu0 0.0
    %194 = vmatmul.mubr.f32.gmra.mrb[0].mxu0 %v100
    %v195 = vpop.f32.mrb[0].mxu0
    %v196 = vadd.f32 %v67, %v195
    %v197 = vpop.f32.mrb[0].mxu0
    %198 = vmatprep.mubr.f32.mxu0 0.0
    %199 = vmatmul.mubr.f32.gmra.mrb[0].mxu0 %v103
    %v200 = vpop.f32.mrb[0].mxu0
    %v201 = vadd.f32 %v72, %v200
    %v202 = vpop.f32.mrb[0].mxu0
    %203 = vmatprep.mubr.f32.mxu0 0.0
    %204 = vmatmul.mubr.f32.gmra.mrb[0].mxu0 %v106
    %v205 = vpop.f32.mrb[0].mxu0
    %v206 = vadd.f32 %v77, %v205
    %v207 = vpop.f32.mrb[0].mxu0
    %208 = vmatprep.mubr.f32.mxu0 0.0
    %209 = vmatmul.mubr.f32.gmra.mrb[0].mxu0 %v109
    %v210 = vpop.f32.mrb[0].mxu0
    %v211 = vadd.f32 %v82, %v210
    %v212 = vpop.f32.mrb[0].mxu0
    %213 = vmatprep.mubr.f32.mxu0 0.0
    %214 = vmatmul.mubr.f32.gmra.mrb[0].mxu0 %v112
    %v215 = vpop.f32.mrb[0].mxu0
    %v216 = vadd.f32 %v87, %v215
    %v217 = vpop.f32.mrb[0].mxu0
    %218 = vdwg.mxu0
    %v219 = vtanh.pop %v181
    %v220 = vtanh.pop %v186
    %v221 = vtanh.pop %v191
    %v222 = vtanh.pop %v196
    %v223 = vtanh.pop %v201
    %v224 = vtanh.pop %v206
    %v225 = vtanh.pop %v211
    %v226 = vtanh.pop %v216
    %v227 = vld [vmem:[%s3] sm:$0xff]
    %v228 = vld [vmem:[%s3 + $0x8] sm:$0xff]
    %v229 = vld [vmem:[%s3 + $0x10] sm:$0xff]
    %v230 = vld [vmem:[%s3 + $0x18] sm:$0xff]
    %v231 = vld [vmem:[%s3 + $0x20] sm:$0xff]
    %v232 = vld [vmem:[%s3 + $0x28] sm:$0xff]
    %v233 = vld [vmem:[%s3 + $0x30] sm:$0xff]
    %v234 = vld [vmem:[%s3 + $0x38] sm:$0xff]
    %v235 = vld [vmem:[%s4] sm:$0xff]
    %v236 = vld [vmem:[%s4 + $0x8] sm:$0xff]
    %v237 = vld [vmem:[%s4 + $0x10] sm:$0xff]
    %v238 = vld [vmem:[%s4 + $0x18] sm:$0xff]
    %v239 = vld [vmem:[%s4 + $0x20] sm:$0xff]
    %v240 = vld [vmem:[%s4 + $0x28] sm:$0xff]
    %v241 = vld [vmem:[%s4 + $0x30] sm:$0xff]
    %v242 = vld [vmem:[%s4 + $0x38] sm:$0xff]
    %244 = vset.pattern.permute.xlu0 0
    %245 = vperm.xlu0 %244, %v235
    %v246 = vpop.permute.xlu0 %245
    %249 = vset.pattern.permute.xlu0 0
    %250 = vperm.xlu0 %249, %v236
    %v251 = vpop.permute.xlu0 %250
    %254 = vset.pattern.permute.xlu0 0
    %255 = vperm.xlu0 %254, %v237
    %v256 = vpop.permute.xlu0 %255
    %259 = vset.pattern.permute.xlu0 0
    %260 = vperm.xlu0 %259, %v238
    %v261 = vpop.permute.xlu0 %260
    %264 = vset.pattern.permute.xlu0 0
    %265 = vperm.xlu0 %264, %v239
    %v266 = vpop.permute.xlu0 %265
    %269 = vset.pattern.permute.xlu0 0
    %270 = vperm.xlu0 %269, %v240
    %v271 = vpop.permute.xlu0 %270
    %274 = vset.pattern.permute.xlu0 0
    %275 = vperm.xlu0 %274, %v241
    %v276 = vpop.permute.xlu0 %275
    %279 = vset.pattern.permute.xlu0 0
    %280 = vperm.xlu0 %279, %v242
    %v281 = vpop.permute.xlu0 %280
    %vm283 = vcmask 523264
    %v285 = vsel %vm283, %v227, 0
    %v288 = vsel %vm283, %v228, 0
    %v291 = vsel %vm283, %v229, 0
    %v294 = vsel %vm283, %v230, 0
    %v297 = vsel %vm283, %v231, 0
    %v300 = vsel %vm283, %v232, 0
    %v303 = vsel %vm283, %v233, 0
    %v306 = vsel %vm283, %v234, 0
    %308 = vmatprep.subr.mxu0 0.0
    %309 = vmatpush1.msra.mxu0 %v219
    %310 = vmatprep.subr.mxu0 0.0
    %311 = vmatpush1.msra.mxu0 %v220
    %312 = vmatprep.subr.mxu0 0.0
    %313 = vmatpush1.msra.mxu0 %v221
    %314 = vmatprep.subr.mxu0 0.0
    %315 = vmatpush1.msra.mxu0 %v222
    %316 = vmatprep.subr.mxu0 0.0
    %317 = vmatpush1.msra.mxu0 %v223
    %318 = vmatprep.subr.mxu0 0.0
    %319 = vmatpush1.msra.mxu0 %v224
    %320 = vmatprep.subr.mxu0 0.0
    %321 = vmatpush1.msra.mxu0 %v225
    %322 = vmatprep.subr.mxu0 0.0
    %323 = vmatpush1.msra.mxu0 %v226
    %324 = vmatprep.subr.mxu0 0.0
    %325 = vmatpush1.msra.mxu0 0.0
    %326 = vmatprep.subr.mxu0 0.0
    %327 = vmatpush1.msra.mxu0 0.0
    %328 = vmatprep.subr.mxu0 0.0
    %329 = vmatpush1.msra.mxu0 0.0
    %330 = vmatprep.subr.mxu0 0.0
    %331 = vmatpush1.msra.mxu0 0.0
    %332 = vmatprep.subr.mxu0 0.0
    %333 = vmatpush1.msra.mxu0 0.0
    %334 = vmatprep.subr.mxu0 0.0
    %335 = vmatpush1.msra.mxu0 0.0
    %336 = vmatprep.subr.mxu0 0.0
    %337 = vmatpush1.msra.mxu0 0.0
    %338 = vmatprep.subr.mxu0 0.0
    %339 = vmatpush1.msra.mxu0 0.0
    %340 = vmatprep.subr.mxu0 0.0
    %341 = vmatpush1.msra.mxu0 0.0
    %342 = vmatprep.subr.mxu0 0.0
    %343 = vmatpush1.msra.mxu0 0.0
    %344 = vmatprep.subr.mxu0 0.0
    %345 = vmatpush1.msra.mxu0 0.0
    %346 = vmatprep.subr.mxu0 0.0
    %347 = vmatpush1.msra.mxu0 0.0
    %348 = vmatprep.subr.mxu0 0.0
    %349 = vmatpush1.msra.mxu0 0.0
    %350 = vmatprep.subr.mxu0 0.0
    %351 = vmatpush1.msra.mxu0 0.0
    %352 = vmatprep.subr.mxu0 0.0
    %353 = vmatpush1.msra.mxu0 0.0
    %354 = vmatprep.subr.mxu0 0.0
    %355 = vmatpush1.msra.mxu0 0.0
    %356 = vmatprep.subr.mxu0 0.0
    %357 = vmatpush1.msra.mxu0 0.0
    %358 = vmatprep.subr.mxu0 0.0
    %359 = vmatpush1.msra.mxu0 0.0
    %360 = vmatprep.subr.mxu0 0.0
    %361 = vmatpush1.msra.mxu0 0.0
    %362 = vmatprep.subr.mxu0 0.0
    %363 = vmatpush1.msra.mxu0 0.0
    %364 = vmatprep.subr.mxu0 0.0
    %365 = vmatpush1.msra.mxu0 0.0
    %366 = vmatprep.subr.mxu0 0.0
    %367 = vmatpush1.msra.mxu0 0.0
    %368 = vmatprep.subr.mxu0 0.0
    %369 = vmatpush1.msra.mxu0 0.0
    %370 = vmatprep.subr.mxu0 0.0
    %371 = vmatpush1.msra.mxu0 0.0
    %372 = vmatprep.mubr.f32.mxu0 0.0
    %373 = vmatmul.mubr.f32.gmra.mrb[0].mxu0 %v285
    %v374 = vpop.f32.mrb[0].mxu0
    %v375 = vadd.f32 %v246, %v374
    %v376 = vpop.f32.mrb[0].mxu0
    %377 = vmatprep.mubr.f32.mxu0 0.0
    %378 = vmatmul.mubr.f32.gmra.mrb[0].mxu0 %v288
    %v379 = vpop.f32.mrb[0].mxu0
    %v380 = vadd.f32 %v251, %v379
    %v381 = vpop.f32.mrb[0].mxu0
    %382 = vmatprep.mubr.f32.mxu0 0.0
    %383 = vmatmul.mubr.f32.gmra.mrb[0].mxu0 %v291
    %v384 = vpop.f32.mrb[0].mxu0
    %v385 = vadd.f32 %v256, %v384
    %v386 = vpop.f32.mrb[0].mxu0
    %387 = vmatprep.mubr.f32.mxu0 0.0
    %388 = vmatmul.mubr.f32.gmra.mrb[0].mxu0 %v294
    %v389 = vpop.f32.mrb[0].mxu0
    %v390 = vadd.f32 %v261, %v389
    %v391 = vpop.f32.mrb[0].mxu0
    %392 = vmatprep.mubr.f32.mxu0 0.0
    %393 = vmatmul.mubr.f32.gmra.mrb[0].mxu0 %v297
    %v394 = vpop.f32.mrb[0].mxu0
    %v395 = vadd.f32 %v266, %v394
    %v396 = vpop.f32.mrb[0].mxu0
    %397 = vmatprep.mubr.f32.mxu0 0.0
    %398 = vmatmul.mubr.f32.gmra.mrb[0].mxu0 %v300
    %v399 = vpop.f32.mrb[0].mxu0
    %v400 = vadd.f32 %v271, %v399
    %v401 = vpop.f32.mrb[0].mxu0
    %402 = vmatprep.mubr.f32.mxu0 0.0
    %403 = vmatmul.mubr.f32.gmra.mrb[0].mxu0 %v303
    %v404 = vpop.f32.mrb[0].mxu0
    %v405 = vadd.f32 %v276, %v404
    %v406 = vpop.f32.mrb[0].mxu0
    %407 = vmatprep.mubr.f32.mxu0 0.0
    %408 = vmatmul.mubr.f32.gmra.mrb[0].mxu0 %v306
    %v409 = vpop.f32.mrb[0].mxu0
    %v410 = vadd.f32 %v281, %v409
    %v411 = vpop.f32.mrb[0].mxu0
    %412 = vdwg.mxu0
    %v413 = vtanh.pop %v375
    %v414 = vtanh.pop %v380
    %v415 = vtanh.pop %v385
    %v416 = vtanh.pop %v390
    %v417 = vtanh.pop %v395
    %v418 = vtanh.pop %v400
    %v419 = vtanh.pop %v405
    %v420 = vtanh.pop %v410
    %v421 = vld [vmem:[%s5] sm:$0x1]
    %v422 = vld [vmem:[#allocation2] sm:$0x1]
    %424 = vset.pattern.permute.xlu0 0
    %425 = vperm.xlu0 %424, %v422
    %v426 = vpop.permute.xlu0 %425
    %v428 = vlaneseq
    %v429 = vshrl.u32 %v428, 7
    %v430 = vsub.s32 0, %v429
    %v431 = vrot.slane %v426, %v430
    %v433 = vsel %vm283, %v421, 0
    %435 = vmatprep.subr.mxu0 0.0
    %436 = vmatpush1.msra.mxu0 %v413
    %437 = vmatprep.subr.mxu0 0.0
    %438 = vmatpush1.msra.mxu0 %v414
    %439 = vmatprep.subr.mxu0 0.0
    %440 = vmatpush1.msra.mxu0 %v415
    %441 = vmatprep.subr.mxu0 0.0
    %442 = vmatpush1.msra.mxu0 %v416
    %443 = vmatprep.subr.mxu0 0.0
    %444 = vmatpush1.msra.mxu0 %v417
    %445 = vmatprep.subr.mxu0 0.0
    %446 = vmatpush1.msra.mxu0 %v418
    %447 = vmatprep.subr.mxu0 0.0
    %448 = vmatpush1.msra.mxu0 %v419
    %449 = vmatprep.subr.mxu0 0.0
    %450 = vmatpush1.msra.mxu0 %v420
    %451 = vmatprep.subr.mxu0 0.0
    %452 = vmatpush1.msra.mxu0 0.0
    %453 = vmatprep.subr.mxu0 0.0
    %454 = vmatpush1.msra.mxu0 0.0
    %455 = vmatprep.subr.mxu0 0.0
    %456 = vmatpush1.msra.mxu0 0.0
    %457 = vmatprep.subr.mxu0 0.0
    %458 = vmatpush1.msra.mxu0 0.0
    %459 = vmatprep.subr.mxu0 0.0
    %460 = vmatpush1.msra.mxu0 0.0
    %461 = vmatprep.subr.mxu0 0.0
    %462 = vmatpush1.msra.mxu0 0.0
    %463 = vmatprep.subr.mxu0 0.0
    %464 = vmatpush1.msra.mxu0 0.0
    %465 = vmatprep.subr.mxu0 0.0
    %466 = vmatpush1.msra.mxu0 0.0
    %467 = vmatprep.subr.mxu0 0.0
    %468 = vmatpush1.msra.mxu0 0.0
    %469 = vmatprep.subr.mxu0 0.0
    %470 = vmatpush1.msra.mxu0 0.0
    %471 = vmatprep.subr.mxu0 0.0
    %472 = vmatpush1.msra.mxu0 0.0
    %473 = vmatprep.subr.mxu0 0.0
    %474 = vmatpush1.msra.mxu0 0.0
    %475 = vmatprep.subr.mxu0 0.0
    %476 = vmatpush1.msra.mxu0 0.0
    %477 = vmatprep.subr.mxu0 0.0
    %478 = vmatpush1.msra.mxu0 0.0
    %479 = vmatprep.subr.mxu0 0.0
    %480 = vmatpush1.msra.mxu0 0.0
    %481 = vmatprep.subr.mxu0 0.0
    %482 = vmatpush1.msra.mxu0 0.0
    %483 = vmatprep.subr.mxu0 0.0
    %484 = vmatpush1.msra.mxu0 0.0
    %485 = vmatprep.subr.mxu0 0.0
    %486 = vmatpush1.msra.mxu0 0.0
    %487 = vmatprep.subr.mxu0 0.0
    %488 = vmatpush1.msra.mxu0 0.0
    %489 = vmatprep.subr.mxu0 0.0
    %490 = vmatpush1.msra.mxu0 0.0
    %491 = vmatprep.subr.mxu0 0.0
    %492 = vmatpush1.msra.mxu0 0.0
    %493 = vmatprep.subr.mxu0 0.0
    %494 = vmatpush1.msra.mxu0 0.0
    %495 = vmatprep.subr.mxu0 0.0
    %496 = vmatpush1.msra.mxu0 0.0
    %497 = vmatprep.subr.mxu0 0.0
    %498 = vmatpush1.msra.mxu0 0.0
    %499 = vmatprep.mubr.f32.mxu0 0.0
    %500 = vmatmul.mubr.f32.gmra.mrb[0].mxu0 %v433
    %v501 = vpop.f32.mrb[0].mxu0
    %v502 = vadd.f32 %v431, %v501
    %v503 = vpop.f32.mrb[0].mxu0
    %504 = vdwg.mxu0
    %505 = vst [vmem:[#allocation3] sm:$0x1] %v502
    // Predicated region
    $region30: #{tpu_custom_call.1} parent=1 // pred_check
      _
    $region31: #{tpu_custom_call.1} parent=1 // pred_check_branch
      %507 = sbr.rel (0) target = $region33
    $region32: #{tpu_custom_call.1} parent=1 // pred_region
      %s509 = ssub.s32 16, 16
      %510 = vsyncadd [#allocation4], %s509
      %s512 = sshll.u32 [#allocation3], 4
      %s513 = int_to_ptr.vmem [resolvable:$true] %s512
      %515 = dma.vmem_to_hbm [thread:$0]  %s513, 16, %s7, [#allocation4]
    $region33: #{tpu_custom_call.1} parent=1 // pred_fallthru
      _
    // Predicated region
    $region34: #{tpu_custom_call.1} parent=1 // pred_check
      _
    $region35: #{tpu_custom_call.1} parent=1 // pred_check_branch
      %517 = sbr.rel (0) target = $region37
    $region36: #{tpu_custom_call.1} parent=1 // pred_region
      %518 = dma.done [#allocation4], 16
    $region37: #{tpu_custom_call.1} parent=1 // pred_fallthru
      _
    %519 = vsyncpa [#allocation4], 1

</llo_original>
